<compile_context>
chip_gen: v7x
topology: tpu7x:2x2x1
jax: 0.10.0
libtpu: 0.0.40
codegen_flags: <defaults>
</compile_context>

<pallas_src>
import functools

import jax
import jax.numpy as jnp
import numpy as np
from jax.experimental import pallas as pl
from jax.experimental.pallas import tpu as pltpu

KERNEL_SIZE = 7
PAD = KERNEL_SIZE // 2


@functools.lru_cache(maxsize=None)
def _roll_matches_jnp() -> bool:
    """Probe pltpu.roll's direction convention once (robust across versions).

    Returns True if pltpu.roll(x, s, axis) == jnp.roll(x, s, axis)
    (i.e. out[i] = x[(i - s) mod n]).
    """
    def probe(x_ref, o_ref):
        o_ref[...] = pltpu.roll(x_ref[...], 1, axis=1)

    x = jnp.arange(8 * 128, dtype=jnp.float32).reshape(8, 128)
    y = pl.pallas_call(probe, out_shape=jax.ShapeDtypeStruct((8, 128), jnp.float32))(x)
    return bool(y[0, 1] == x[0, 0])


def _make_kernel(img_w: int, valid_h: int, roll_matches_jnp: bool):
    """Build the SpatialAttention kernel for one lane-packed (C, Hp, Wp) block.

    img_w   : width of a single image inside the packed lane axis
    valid_h : number of valid (un-padded) rows
    """
    K, P = KERNEL_SIZE, PAD

    def _amt(offset: int, size: int) -> int:
        # roll amount so that shifted[i] == plane[i + offset]
        a = -offset if roll_matches_jnp else offset
        return a % size

    def kernel(w_ref, x_ref, o_ref):
        # w_ref : (2*K*K,) SMEM  — flat conv taps, PyTorch (1,2,K,K) order
        # x_ref : (1, C, Hp, Wp) VMEM — lane-packed, (8,128)-padded batch group
        # o_ref : (1, C, Hp, Wp) VMEM
        x = x_ref[0]                                   # (C, Hp, Wp)
        C, Hp, Wp = x.shape
        xf = x.astype(jnp.float32)                     # f32 accumulation

        # ---- channel reductions (dim=1 of NCHW) --------------------------
        avg = jnp.mean(xf, axis=0)                     # (Hp, Wp)
        mx = jnp.max(xf, axis=0)                       # (Hp, Wp)

        # ---- hoist all 2*K*K weight taps out of the conv loops -----------
        taps = [[[w_ref[(c * K + di) * K + dj] for dj in range(K)]
                 for di in range(K)] for c in range(2)]

        # Within-image column index and row index (hoisted iotas).
        col = jax.lax.broadcasted_iota(jnp.int32, (Hp, Wp), 1) % img_w
        row = jax.lax.broadcasted_iota(jnp.int32, (Hp, Wp), 0)

        # ---- lane-rolled (boundary-masked) copies of both planes ---------
        # 2 channels x 7 column offsets = 14 XLU lane rolls, vreg resident.
        # Masks are correct at all valid output lanes (padded lanes are
        # discarded by the wrapper), so one comparison per offset suffices.
        planes = (avg, mx)
        rolled = [[None] * K for _ in range(2)]
        for dj in range(K):
            s = dj - P                                 # column offset
            if s == 0:
                for c in range(2):
                    rolled[c][dj] = planes[c]
            else:
                ok = (col < img_w - s) if s > 0 else (col >= -s)
                amt = _amt(s, Wp)
                for c in range(2):
                    shifted = pltpu.roll(planes[c], amt, axis=1)
                    rolled[c][dj] = jnp.where(ok, shifted, 0.0)

        # ---- 7x7 conv: VPU FMAs per row offset + one sublane roll each ---
        acc = jnp.zeros((Hp, Wp), jnp.float32)
        for di in range(K):
            t = di - P                                 # row offset
            partial = jnp.zeros((Hp, Wp), jnp.float32)
            for c in range(2):
                for dj in range(K):
                    partial = partial + taps[c][di][dj] * rolled[c][dj]
            if t == 0:
                acc = acc + partial
            else:
                ok = (row < valid_h - t) if t > 0 else (row >= -t)
                shifted = pltpu.roll(partial, _amt(t, Hp), axis=0)
                acc = acc + jnp.where(ok, shifted, 0.0)

        gate = jax.nn.sigmoid(acc)                     # EUP (free slot)
        o_ref[0] = (xf * gate[None, :, :]).astype(o_ref.dtype)

    return kernel


def spatial_attention(x, w, *, images_per_step=None):
    """CBAM SpatialAttention forward. x: (N, C, H, W); w: (1, 2, 7, 7)."""
    N, C, H, W = x.shape
    assert w.shape == (1, 2, KERNEL_SIZE, KERNEL_SIZE)

    # Pack NB images side by side along the lane axis (lane-dense layout).
    if images_per_step is None:
        target = max(1, 128 // W)
        nb = 1
        for cand in range(min(N, target), 0, -1):
            if N % cand == 0:
                nb = cand
                break
    else:
        nb = images_per_step
        assert N % nb == 0
    G = N // nb                                        # grid steps (batch groups)
    Wp = nb * W

    # Pad rows/lanes up to the native (8, 128) tile grid: unmasked vld/vst and
    # pltpu.roll on full tiles. Padding never bleeds into valid outputs because
    # the conv masks sources per image column / valid row and the wrapper
    # slices the padded rows/lanes away.
    Hp = ((H + 7) // 8) * 8
    Wpad = ((Wp + 127) // 128) * 128

    xp = x.reshape(G, nb, C, H, W).transpose(0, 2, 3, 1, 4).reshape(G, C, H, Wp)
    xp = jnp.pad(xp, ((0, 0), (0, 0), (0, Hp - H), (0, Wpad - Wp)))

    w_flat = w.reshape(-1).astype(jnp.float32)         # 98 scalar taps -> SMEM

    kernel = _make_kernel(img_w=W, valid_h=H,
                          roll_matches_jnp=_roll_matches_jnp())

    block_bytes = C * Hp * Wpad * xp.dtype.itemsize
    # in + out double-buffered plus headroom for in-kernel temporaries.
    vmem_limit = int(min(48 * 1024 * 1024, max(16 * 1024 * 1024, 8 * block_bytes)))
    # TODO(synk): for production U-Net feature-map sizes (e.g. C=64, 256x256+),
    # tile H into row strips with a PAD-row halo so blocks fit v7x's 64 MiB VMEM.

    out_p = pl.pallas_call(
        kernel,
        out_shape=jax.ShapeDtypeStruct((G, C, Hp, Wpad), x.dtype),
        grid=(G,),
        in_specs=[
            pl.BlockSpec(memory_space=pltpu.SMEM),                    # conv taps
            pl.BlockSpec((1, C, Hp, Wpad), lambda g: (g, 0, 0, 0)),   # x group
        ],
        out_specs=pl.BlockSpec((1, C, Hp, Wpad), lambda g: (g, 0, 0, 0)),
        compiler_params=pltpu.CompilerParams(
            dimension_semantics=("parallel",),    # batch groups are independent
            vmem_limit_bytes=vmem_limit,
        ),
    )(w_flat, xp)

    out = out_p[:, :, :H, :Wp]
    return out.reshape(G, C, H, nb, W).transpose(0, 3, 1, 2, 4).reshape(N, C, H, W)


def spatial_attention_reference(x, w):
    """Pure-JAX reference matching the PyTorch module."""
    avg = jnp.mean(x, axis=1, keepdims=True)
    mx = jnp.max(x, axis=1, keepdims=True)
    y = jnp.concatenate([avg, mx], axis=1)
    y = jax.lax.conv_general_dilated(
        y, w, window_strides=(1, 1), padding=[(PAD, PAD), (PAD, PAD)],
        dimension_numbers=("NCHW", "OIHW", "NCHW"),
        precision=jax.lax.Precision.HIGHEST)
    return x * jax.nn.sigmoid(y)


if __name__ == "__main__":
    key = jax.random.PRNGKey(0)
    kx, kw = jax.random.split(key)

    # Small, module-consistent shapes: batch=2, channels=4, spatial=16x16.
    x = jax.random.normal(kx, (2, 4, 16, 16), dtype=jnp.float32)

    # Deterministic Conv2d(2, 1, 7, bias=False) weight, kaiming-uniform-like.
    fan_in = 2 * KERNEL_SIZE * KERNEL_SIZE
    bound = 1.0 / (fan_in ** 0.5)
    w = jax.random.uniform(kw, (1, 2, KERNEL_SIZE, KERNEL_SIZE),
                           jnp.float32, minval=-bound, maxval=bound)

    out = spatial_attention(x, w)
    jax.block_until_ready(out)

    ref = spatial_attention_reference(x, w)
    np.testing.assert_allclose(np.asarray(out), np.asarray(ref),
                               rtol=1e-5, atol=1e-5)
    assert out.shape == x.shape and out.dtype == x.dtype
    print("KERNEL_OK")
</pallas_src>

<mosaic_0001>
module attributes {stable_mosaic.version = 11 : i64} {
  func.func @probe(%arg0: memref<8x128xf32, #tpu.memory_space<vmem>>, %arg1: memref<8x128xf32, #tpu.memory_space<vmem>>) attributes {dimension_semantics = [], scalar_prefetch = 0 : i64, scratch_operands = 0 : i64, tpu.core_type = #tpu.core_type<tc>} {
    %c0 = arith.constant 0 : index
    %c0_0 = arith.constant 0 : index
    %0 = vector.load %arg0[%c0, %c0_0] : memref<8x128xf32, #tpu.memory_space<vmem>>, vector<8x128xf32>
    %c1_i32 = arith.constant 1 : i32
    %1 = tpu.dynamic_rotate %0 by %c1_i32 dim 1 : vector<8x128xf32>, i32 -> vector<8x128xf32>
    %c0_1 = arith.constant 0 : index
    %c0_2 = arith.constant 0 : index
    %2 = vector.load %arg1[%c0_1, %c0_2] : memref<8x128xf32, #tpu.memory_space<vmem>>, vector<8x128xf32>
    tpu.vector_store %arg1[%c0_1, %c0_2], %1 {strides = array<i32>} : memref<8x128xf32, #tpu.memory_space<vmem>>, vector<8x128xf32>,
    return
  }
}

</mosaic_0001>

<llo_original>
// kernel: tpu_custom_call.1
$region0: #{tpu_custom_call.1}
  #allocation0 [shape = 'u32[]', space=smem, size = 0x4, offset = 0x4, fixed_abs, tag = 'smem constant byte address 0x4 - core index']
  #allocation1 [shape = 'u32[144,128]{1,0:T(1,128)}', space=vmem, size = 0x12000, scoped, tag = 'internal scratch']
  %s0 = inlined_call_operand.hbm [shape: f32[8,128], index: 0, kind: input, shape index: {}]
  %s1 = inlined_call_operand.hbm [shape: f32[8,128], index: 1, kind: output, shape index: {}]
  %s2 = sld [smem:[#allocation0]]
  $region18: #{tpu_custom_call.1} parent=0
    _
  %s4 = ssub.s32 1, %s2
  %s5 = scalar_select 0, %s4, %s2
  $region1: #{tpu_custom_call.1} parent=0
    #allocation2 [shape = 'u8[4096]{0}', space=vmem, size = 0x1000, scoped, tag = 'input window, operand 0, single buffered']
    #allocation3 [shape = 's32[1]{0}', space=sflag, size = 0x4, scoped, tag = 'scoped memory for tpu_custom_call.1']
    #allocation4 [shape = 's32[1]{0}', space=sflag, size = 0x4, scoped, tag = 'scoped memory for tpu_custom_call.1']
    #allocation5 [shape = 'u8[4096]{0}', space=vmem, size = 0x1000, scoped, tag = 'output window, operand 0, single buffered']
    %6 = vsyncpa [#allocation3], 0
    %7 = vsyncpa [#allocation4], 0
    // Predicated region
    $region2: #{tpu_custom_call.1} parent=1 // pred_check
      _
    $region3: #{tpu_custom_call.1} parent=1 // pred_check_branch
      %9 = sbr.rel (0) target = $region5
    $region4: #{tpu_custom_call.1} parent=1 // pred_region
      %s11 = ssub.s32 128, 128
      %12 = vsyncadd [#allocation3], %s11
      %s14 = sshll.u32 [#allocation2], 4
      %s15 = int_to_ptr.vmem [resolvable:$true] %s14
      %17 = dma.hbm_to_vmem [thread:$0]  %s0, 128, %s15, [#allocation3]
    $region5: #{tpu_custom_call.1} parent=1 // pred_fallthru
      _
    // Predicated region
    $region6: #{tpu_custom_call.1} parent=1 // pred_check
      _
    $region7: #{tpu_custom_call.1} parent=1 // pred_check_branch
      %19 = sbr.rel (0) target = $region9
    $region8: #{tpu_custom_call.1} parent=1 // pred_region
      %20 = dma.done [#allocation3], 128
    $region9: #{tpu_custom_call.1} parent=1 // pred_fallthru
      _
    %v21 = vld [vmem:[#allocation2] sm:$0xff]
    %22 = vrot.lane.b32.xlu0 %v21, 1
    %v23 = vpop.permute.xlu0 %22
    %24 = vst [vmem:[#allocation5] sm:$0xff] %v23
    // Predicated region
    $region10: #{tpu_custom_call.1} parent=1 // pred_check
      _
    $region11: #{tpu_custom_call.1} parent=1 // pred_check_branch
      %26 = sbr.rel (0) target = $region13
    $region12: #{tpu_custom_call.1} parent=1 // pred_region
      %s28 = ssub.s32 128, 128
      %29 = vsyncadd [#allocation4], %s28
      %s31 = sshll.u32 [#allocation5], 4
      %s32 = int_to_ptr.vmem [resolvable:$true] %s31
      %34 = dma.vmem_to_hbm [thread:$0]  %s32, 128, %s1, [#allocation4]
    $region13: #{tpu_custom_call.1} parent=1 // pred_fallthru
      _
    // Predicated region
    $region14: #{tpu_custom_call.1} parent=1 // pred_check
      _
    $region15: #{tpu_custom_call.1} parent=1 // pred_check_branch
      %36 = sbr.rel (0) target = $region17
    $region16: #{tpu_custom_call.1} parent=1 // pred_region
      %37 = dma.done [#allocation4], 128
    $region17: #{tpu_custom_call.1} parent=1 // pred_fallthru
      _
    %38 = vsyncpa [#allocation3], 1
    %39 = vsyncpa [#allocation4], 1

</llo_original>
